<compile_context>
chip_gen: v7x
topology: tpu7x:2x2x1
jax: 0.10.0
libtpu: 0.0.40
codegen_flags: <defaults>
</compile_context>

<pallas_src>
import functools

import jax
import jax.numpy as jnp
from jax.experimental import pallas as pl
from jax.experimental.pallas import tpu as pltpu

_EPS = 1e-5
_SUBLANE = 8


def _round_up(x, m):
    return (x + m - 1) // m * m


# ---------------------------------------------------------------------------
# Kernel body: one (TM, C) pixel tile.
# ---------------------------------------------------------------------------
def _block_kernel(x_ref, w1_ref, b1_ref, w2_ref, b2_ref, w3_ref, b3_ref, o_ref,
                  *, compute_dtype):
    x = x_ref[...]

    def conv(h, w_ref, b_ref):
        # Folded 1x1 conv + eval-mode BN == channel matmul on the MXU.
        # Weights were pre-cast to compute_dtype in the wrapper; accumulate f32.
        y = jnp.dot(h.astype(compute_dtype), w_ref[...],
                    preferred_element_type=jnp.float32)
        return y + b_ref[...]

    h = jnp.maximum(conv(x, w1_ref, b1_ref), 0.0)
    h = jnp.maximum(conv(h, w2_ref, b2_ref), 0.0)
    h = conv(h, w3_ref, b3_ref)
    # Defer the identity upcast to the final add (smaller live set).
    o_ref[...] = jnp.maximum(h + x.astype(jnp.float32), 0.0).astype(o_ref.dtype)


# ---------------------------------------------------------------------------
# BN fold + tiling helpers.
# ---------------------------------------------------------------------------
def _fold_conv_bn(w, b, gamma, beta, mean, var, eps=_EPS):
    """Fold conv bias + eval-mode BatchNorm into (W', b') with y = x @ W' + b'."""
    s = gamma * jax.lax.rsqrt(var + eps)          # (Cout,)
    w_f = w * s[None, :]
    b_f = (b - mean) * s + beta
    return w_f, b_f


def _choose_tiling(M, Cin, Cmid, Cout, in_bytes, out_bytes, w_bytes, vmem_cap):
    """Pick (tm, m_pad): tile rows and (possibly padded) total rows."""
    weight_bytes = (w_bytes * (Cin * Cmid + Cmid * Cmid + Cmid * Cout)
                    + 4 * (2 * Cmid + Cout))
    # Per pixel-row VMEM: double-buffered input + output tiles and ~3 live f32
    # intermediates inside the body.
    per_row = (2 * Cin * in_bytes + 2 * Cout * out_bytes
               + 4 * 3 * max(Cin, Cmid, Cout))
    budget = max(int(vmem_cap * 0.6) - weight_bytes, _SUBLANE * per_row)
    tm_cap = min(max(budget // per_row, _SUBLANE), 8192)
    tm_cap = tm_cap // _SUBLANE * _SUBLANE

    m8 = _round_up(M, _SUBLANE)
    # Keep >= 2 grid steps whenever there is enough work so v7x's two
    # TensorCores both get tiles under dimension_semantics=("parallel",).
    if m8 >= 2 * _SUBLANE:
        tm_cap = min(tm_cap, max(_SUBLANE, (m8 // 2) // _SUBLANE * _SUBLANE))
    else:
        tm_cap = min(tm_cap, m8)

    # Prefer a tile that divides M exactly: no padded tail, no output slice.
    if M % _SUBLANE == 0:
        t = tm_cap
        while t >= _SUBLANE:
            if M % t == 0 and (t >= 256 or t * 8 >= tm_cap):
                return t, M
            t -= _SUBLANE

    # Fallback: balanced padded tiles (last tile rows are garbage, sliced off).
    n_steps = -(-m8 // tm_cap)
    tm = _round_up(-(-m8 // n_steps), _SUBLANE)
    return tm, tm * n_steps


# ---------------------------------------------------------------------------
# Wrappers.
# ---------------------------------------------------------------------------
def block_forward_nhwc(x_nhwc, params, *, compute_dtype=jnp.bfloat16):
    """Residual block on channels-last input: (N, H, W, C) -> (N, H, W, C)."""
    N, H, W, Cin = x_nhwc.shape
    Cmid = params["w1"].shape[1]
    Cout = params["w3"].shape[1]
    if Cout != Cin:
        raise ValueError("identity add requires in_channels == out_channels "
                         "(identity_downsample=None, expansion=1, stride=1)")
    M = N * H * W

    # Fold eval-mode BN (+ conv bias) into per-layer weight/bias; cast weights
    # to the explicit compute dtype, keep biases f32 (added to f32 accumulator).
    w1, b1 = _fold_conv_bn(params["w1"], params["b1"], params["g1"],
                           params["be1"], params["rm1"], params["rv1"])
    w2, b2 = _fold_conv_bn(params["w2"], params["b2"], params["g2"],
                           params["be2"], params["rm2"], params["rv2"])
    w3, b3 = _fold_conv_bn(params["w3"], params["b3"], params["g3"],
                           params["be3"], params["rm3"], params["rv3"])
    w1 = w1.astype(compute_dtype)
    w2 = w2.astype(compute_dtype)
    w3 = w3.astype(compute_dtype)
    b1 = b1.astype(jnp.float32).reshape(1, Cmid)
    b2 = b2.astype(jnp.float32).reshape(1, Cmid)
    b3 = b3.astype(jnp.float32).reshape(1, Cout)

    in_bytes = x_nhwc.dtype.itemsize
    out_bytes = in_bytes
    w_bytes = jnp.dtype(compute_dtype).itemsize
    try:
        vmem_cap = pltpu.get_tpu_info().vmem_capacity_bytes
    except Exception:
        vmem_cap = 64 * 1024 * 1024   # conservative (v7x per-TC)

    tm, m_pad = _choose_tiling(M, Cin, Cmid, Cout,
                               in_bytes, out_bytes, w_bytes, vmem_cap)

    x2d = x_nhwc.reshape(M, Cin)
    if m_pad != M:
        # TODO(synk): a masked last tile would avoid this extra HBM pass; the
        # padded rows produce relu(b3') garbage that the final slice removes.
        x2d = jnp.pad(x2d, ((0, m_pad - M), (0, 0)))

    grid = (m_pad // tm,)

    weight_bytes = (w_bytes * (Cin * Cmid + Cmid * Cmid + Cmid * Cout)
                    + 4 * (2 * Cmid + Cout))
    need = (weight_bytes
            + 2 * tm * Cin * in_bytes + 2 * tm * Cout * out_bytes
            + 4 * 3 * tm * max(Cin, Cmid, Cout))
    vmem_limit = int(min(vmem_cap * 0.85,
                         max(need + (4 << 20), 32 << 20)))

    flops = 2 * m_pad * (Cin * Cmid + Cmid * Cmid + Cmid * Cout)
    bytes_accessed = (in_bytes * m_pad * Cin + out_bytes * m_pad * Cout
                      + weight_bytes)

    def _const_spec(shape):
        # Constant index_map -> DMA'd once; single-buffer to free VMEM.
        return pl.BlockSpec(shape, lambda i: (0, 0),
                            pipeline_mode=pl.Buffered(1))

    out2d = pl.pallas_call(
        functools.partial(_block_kernel, compute_dtype=compute_dtype),
        out_shape=jax.ShapeDtypeStruct((m_pad, Cout), x_nhwc.dtype),
        grid_spec=pltpu.PrefetchScalarGridSpec(
            num_scalar_prefetch=0,
            grid=grid,
            in_specs=[
                pl.BlockSpec((tm, Cin), lambda i: (i, 0)),   # x tile
                _const_spec((Cin, Cmid)),                    # W1'
                _const_spec((1, Cmid)),                      # b1'
                _const_spec((Cmid, Cmid)),                   # W2'
                _const_spec((1, Cmid)),                      # b2'
                _const_spec((Cmid, Cout)),                   # W3'
                _const_spec((1, Cout)),                      # b3'
            ],
            out_specs=pl.BlockSpec((tm, Cout), lambda i: (i, 0)),
        ),
        compiler_params=pltpu.CompilerParams(
            dimension_semantics=("parallel",),   # shard tiles over v7x's 2 TCs
            vmem_limit_bytes=vmem_limit,
        ),
        cost_estimate=pl.CostEstimate(
            flops=int(flops), transcendentals=0,
            bytes_accessed=int(bytes_accessed)),
    )(x2d, w1, b1, w2, b2, w3, b3)

    if m_pad != M:
        out2d = out2d[:M]
    return out2d.reshape(N, H, W, Cout)


def block_forward(x_nchw, params, *, compute_dtype=jnp.bfloat16):
    """NCHW wrapper for PyTorch-layout compatibility.

    Prefer block_forward_nhwc in a channels-last pipeline: each transpose here
    is an extra HBM round-trip of the activation around the kernel.
    """
    out = block_forward_nhwc(jnp.transpose(x_nchw, (0, 2, 3, 1)), params,
                             compute_dtype=compute_dtype)
    return jnp.transpose(out, (0, 3, 1, 2))


# ---------------------------------------------------------------------------
# Synthetic params + references for the self-check.
# ---------------------------------------------------------------------------
def init_params(key, in_channels, intermediate_channels):
    """Deterministic synthetic params matching the module's shapes."""
    exp = 1
    c_mid = intermediate_channels
    c_out = intermediate_channels * exp
    keys = jax.random.split(key, 18)

    def conv_w(k, cin, cout):
        std = (2.0 / cin) ** 0.5
        return jax.random.normal(k, (cin, cout), jnp.float32) * std

    def layer(ks, cin, cout):
        return {
            "w": conv_w(ks[0], cin, cout),
            "b": jax.random.normal(ks[1], (cout,), jnp.float32) * 0.05,
            "g": 1.0 + jax.random.normal(ks[2], (cout,), jnp.float32) * 0.1,
            "be": jax.random.normal(ks[3], (cout,), jnp.float32) * 0.1,
            "rm": jax.random.normal(ks[4], (cout,), jnp.float32) * 0.1,
            "rv": 1.0 + jnp.abs(jax.random.normal(ks[5], (cout,), jnp.float32)) * 0.2,
        }

    layers = (layer(keys[0:6], in_channels, c_mid),
              layer(keys[6:12], c_mid, c_mid),
              layer(keys[12:18], c_mid, c_out))
    params = {}
    for i, l in enumerate(layers, start=1):
        for name, v in l.items():
            params[f"{name}{i}"] = v
    return params


def _reference_forward(x_nchw, params):
    """Plain-JAX f32 eval-mode reference (unfolded BN) — module semantics."""
    N, Cin, H, W = x_nchw.shape
    Cout = params["w3"].shape[1]
    x2d = jnp.transpose(x_nchw, (0, 2, 3, 1)).reshape(N * H * W, Cin)
    identity = x2d

    def conv_bn(h, i):
        y = jnp.dot(h, params[f"w{i}"],
                    precision=jax.lax.Precision.HIGHEST) + params[f"b{i}"]
        inv = jax.lax.rsqrt(params[f"rv{i}"] + _EPS)
        return (y - params[f"rm{i}"]) * inv * params[f"g{i}"] + params[f"be{i}"]

    h = jnp.maximum(conv_bn(x2d, 1), 0.0)
    h = jnp.maximum(conv_bn(h, 2), 0.0)
    h = conv_bn(h, 3)
    out = jnp.maximum(h + identity, 0.0)
    return jnp.transpose(out.reshape(N, H, W, Cout), (0, 3, 1, 2))


def _reference_forward_folded(x_nchw, params, compute_dtype):
    """Reference doing exactly the kernel's folded/low-precision math."""
    N, Cin, H, W = x_nchw.shape
    Cout = params["w3"].shape[1]
    x2d = jnp.transpose(x_nchw, (0, 2, 3, 1)).reshape(N * H * W, Cin)

    def conv(h, i):
        w, b = _fold_conv_bn(params[f"w{i}"], params[f"b{i}"], params[f"g{i}"],
                             params[f"be{i}"], params[f"rm{i}"], params[f"rv{i}"])
        y = jnp.dot(h.astype(compute_dtype), w.astype(compute_dtype),
                    preferred_element_type=jnp.float32)
        return y + b.astype(jnp.float32)

    h = jnp.maximum(conv(x2d, 1), 0.0)
    h = jnp.maximum(conv(h, 2), 0.0)
    h = conv(h, 3)
    out = jnp.maximum(h + x2d.astype(jnp.float32), 0.0).astype(x_nchw.dtype)
    return jnp.transpose(out.reshape(N, H, W, Cout), (0, 3, 1, 2))


if __name__ == "__main__":
    # Module-consistent shapes; identity add requires in_channels ==
    # intermediate_channels (expansion=1, stride=1, identity_downsample=None),
    # as in ResNet.layer1 (C=64).  M = 2*16*16 = 512 -> grid of 2 tiles.
    N, C, H, W = 2, 64, 16, 16
    key = jax.random.PRNGKey(0)
    kx, kp = jax.random.split(key)

    x = jax.random.normal(kx, (N, C, H, W), jnp.float32)
    params = init_params(kp, in_channels=C, intermediate_channels=C)

    out = jax.block_until_ready(block_forward(x, params))
    assert out.shape == (N, C, H, W)

    # Tight check against a reference doing the same folded bf16 math.
    ref_folded = jax.block_until_ready(
        _reference_forward_folded(x, params, jnp.bfloat16))
    err_folded = float(jnp.max(jnp.abs(out - ref_folded)))
    assert bool(jnp.allclose(out, ref_folded, atol=1e-3, rtol=1e-3)), err_folded

    # Loose sanity check against the exact f32 module semantics (bf16 matmul
    # rounding is the only difference).
    ref_f32 = jax.block_until_ready(_reference_forward(x, params))
    err_f32 = float(jnp.max(jnp.abs(out - ref_f32)))
    assert bool(jnp.allclose(out, ref_f32, atol=2e-1, rtol=1e-1)), err_f32

    print("KERNEL_OK")
</pallas_src>

<mosaic_0001>
module attributes {stable_mosaic.version = 11 : i64} {
  func.func @_block_kernel(%arg0: i32, %arg1: memref<256x64xf32, #tpu.memory_space<vmem>>, %arg2: memref<64x64xbf16, #tpu.memory_space<vmem>>, %arg3: memref<1x64xf32, #tpu.memory_space<vmem>>, %arg4: memref<64x64xbf16, #tpu.memory_space<vmem>>, %arg5: memref<1x64xf32, #tpu.memory_space<vmem>>, %arg6: memref<64x64xbf16, #tpu.memory_space<vmem>>, %arg7: memref<1x64xf32, #tpu.memory_space<vmem>>, %arg8: memref<256x64xf32, #tpu.memory_space<vmem>>) attributes {dimension_semantics = [#tpu.dimension_semantics<parallel>], iteration_bounds = array<i64: 2>, scalar_prefetch = 0 : i64, scratch_operands = 0 : i64, tpu.core_type = #tpu.core_type<tc>, window_params = [{transform_indices = @transform_0, window_bounds = array<i64: 256, 64>}, {pipeline_mode = #tpu.pipeline_mode<synchronous>, transform_indices = @transform_1, window_bounds = array<i64: 64, 64>}, {pipeline_mode = #tpu.pipeline_mode<synchronous>, transform_indices = @transform_2, window_bounds = array<i64: 1, 64>}, {pipeline_mode = #tpu.pipeline_mode<synchronous>, transform_indices = @transform_3, window_bounds = array<i64: 64, 64>}, {pipeline_mode = #tpu.pipeline_mode<synchronous>, transform_indices = @transform_4, window_bounds = array<i64: 1, 64>}, {pipeline_mode = #tpu.pipeline_mode<synchronous>, transform_indices = @transform_5, window_bounds = array<i64: 64, 64>}, {pipeline_mode = #tpu.pipeline_mode<synchronous>, transform_indices = @transform_6, window_bounds = array<i64: 1, 64>}, {transform_indices = @transform_7, window_bounds = array<i64: 256, 64>}]} {
    %c0 = arith.constant 0 : index
    %c0_0 = arith.constant 0 : index
    %0 = vector.load %arg1[%c0, %c0_0] : memref<256x64xf32, #tpu.memory_space<vmem>>, vector<256x64xf32>
    %1 = arith.truncf %0 : vector<256x64xf32> to vector<256x64xbf16>
    %c0_1 = arith.constant 0 : index
    %c0_2 = arith.constant 0 : index
    %2 = vector.load %arg2[%c0_1, %c0_2] : memref<64x64xbf16, #tpu.memory_space<vmem>>, vector<64x64xbf16>
    %cst = arith.constant dense<0.000000e+00> : vector<256x64xf32>
    %3 = tpu.matmul %1, %2, %cst {dimension_numbers = #tpu.dot_dimension_numbers<[1], [0], [0], [1], [0, 0, 1, 1], [], []>} : vector<256x64xbf16>, vector<64x64xbf16>, vector<256x64xf32> -> vector<256x64xf32>
    %c0_3 = arith.constant 0 : index
    %c0_4 = arith.constant 0 : index
    %4 = vector.load %arg3[%c0_3, %c0_4] : memref<1x64xf32, #tpu.memory_space<vmem>>, vector<1x64xf32>
    %5 = vector.broadcast %4 : vector<1x64xf32> to vector<256x64xf32>
    %6 = arith.addf %3, %5 : vector<256x64xf32>
    %cst_5 = arith.constant 0.000000e+00 : f32
    %7 = vector.broadcast %cst_5 : f32 to vector<256x64xf32>
    %8 = arith.maximumf %6, %7 : vector<256x64xf32>
    %9 = arith.truncf %8 : vector<256x64xf32> to vector<256x64xbf16>
    %c0_6 = arith.constant 0 : index
    %c0_7 = arith.constant 0 : index
    %10 = vector.load %arg4[%c0_6, %c0_7] : memref<64x64xbf16, #tpu.memory_space<vmem>>, vector<64x64xbf16>
    %cst_8 = arith.constant dense<0.000000e+00> : vector<256x64xf32>
    %11 = tpu.matmul %9, %10, %cst_8 {dimension_numbers = #tpu.dot_dimension_numbers<[1], [0], [0], [1], [0, 0, 1, 1], [], []>} : vector<256x64xbf16>, vector<64x64xbf16>, vector<256x64xf32> -> vector<256x64xf32>
    %c0_9 = arith.constant 0 : index
    %c0_10 = arith.constant 0 : index
    %12 = vector.load %arg5[%c0_9, %c0_10] : memref<1x64xf32, #tpu.memory_space<vmem>>, vector<1x64xf32>
    %13 = vector.broadcast %12 : vector<1x64xf32> to vector<256x64xf32>
    %14 = arith.addf %11, %13 : vector<256x64xf32>
    %cst_11 = arith.constant 0.000000e+00 : f32
    %15 = vector.broadcast %cst_11 : f32 to vector<256x64xf32>
    %16 = arith.maximumf %14, %15 : vector<256x64xf32>
    %17 = arith.truncf %16 : vector<256x64xf32> to vector<256x64xbf16>
    %c0_12 = arith.constant 0 : index
    %c0_13 = arith.constant 0 : index
    %18 = vector.load %arg6[%c0_12, %c0_13] : memref<64x64xbf16, #tpu.memory_space<vmem>>, vector<64x64xbf16>
    %cst_14 = arith.constant dense<0.000000e+00> : vector<256x64xf32>
    %19 = tpu.matmul %17, %18, %cst_14 {dimension_numbers = #tpu.dot_dimension_numbers<[1], [0], [0], [1], [0, 0, 1, 1], [], []>} : vector<256x64xbf16>, vector<64x64xbf16>, vector<256x64xf32> -> vector<256x64xf32>
    %c0_15 = arith.constant 0 : index
    %c0_16 = arith.constant 0 : index
    %20 = vector.load %arg7[%c0_15, %c0_16] : memref<1x64xf32, #tpu.memory_space<vmem>>, vector<1x64xf32>
    %21 = vector.broadcast %20 : vector<1x64xf32> to vector<256x64xf32>
    %22 = arith.addf %19, %21 : vector<256x64xf32>
    %23 = arith.addf %22, %0 : vector<256x64xf32>
    %cst_17 = arith.constant 0.000000e+00 : f32
    %24 = vector.broadcast %cst_17 : f32 to vector<256x64xf32>
    %25 = arith.maximumf %23, %24 : vector<256x64xf32>
    %c0_18 = arith.constant 0 : index
    %c0_19 = arith.constant 0 : index
    %26 = vector.load %arg8[%c0_18, %c0_19] : memref<256x64xf32, #tpu.memory_space<vmem>>, vector<256x64xf32>
    tpu.vector_store %arg8[%c0_18, %c0_19], %25 {strides = array<i32>} : memref<256x64xf32, #tpu.memory_space<vmem>>, vector<256x64xf32>,
    return
  }
  func.func @transform_0(%arg0: i32) -> (i32, i32) {
    %c0_i32 = arith.constant 0 : i32
    %c0_i32_0 = arith.constant 0 : i32
    return %arg0, %c0_i32 : i32, i32
  }
  func.func @transform_1(%arg0: i32) -> (i32, i32) {
    %c0_i32 = arith.constant 0 : i32
    %c0_i32_0 = arith.constant 0 : i32
    %c0_i32_1 = arith.constant 0 : i32
    return %c0_i32, %c0_i32_0 : i32, i32
  }
  func.func @transform_2(%arg0: i32) -> (i32, i32) {
    %c0_i32 = arith.constant 0 : i32
    %c0_i32_0 = arith.constant 0 : i32
    %c0_i32_1 = arith.constant 0 : i32
    return %c0_i32, %c0_i32_0 : i32, i32
  }
  func.func @transform_3(%arg0: i32) -> (i32, i32) {
    %c0_i32 = arith.constant 0 : i32
    %c0_i32_0 = arith.constant 0 : i32
    %c0_i32_1 = arith.constant 0 : i32
    return %c0_i32, %c0_i32_0 : i32, i32
  }
  func.func @transform_4(%arg0: i32) -> (i32, i32) {
    %c0_i32 = arith.constant 0 : i32
    %c0_i32_0 = arith.constant 0 : i32
    %c0_i32_1 = arith.constant 0 : i32
    return %c0_i32, %c0_i32_0 : i32, i32
  }
  func.func @transform_5(%arg0: i32) -> (i32, i32) {
    %c0_i32 = arith.constant 0 : i32
    %c0_i32_0 = arith.constant 0 : i32
    %c0_i32_1 = arith.constant 0 : i32
    return %c0_i32, %c0_i32_0 : i32, i32
  }
  func.func @transform_6(%arg0: i32) -> (i32, i32) {
    %c0_i32 = arith.constant 0 : i32
    %c0_i32_0 = arith.constant 0 : i32
    %c0_i32_1 = arith.constant 0 : i32
    return %c0_i32, %c0_i32_0 : i32, i32
  }
  func.func @transform_7(%arg0: i32) -> (i32, i32) {
    %c0_i32 = arith.constant 0 : i32
    %c0_i32_0 = arith.constant 0 : i32
    return %arg0, %c0_i32 : i32, i32
  }
}

</mosaic_0001>

<llo_original>
// kernel: tpu_custom_call.1
$region0: #{tpu_custom_call.1}
  #allocation0 [shape = 'u32[]', space=smem, size = 0x4, offset = 0x4, fixed_abs, tag = 'smem constant byte address 0x4 - core index']
  #allocation1 [shape = 'u32[144,128]{1,0:T(1,128)}', space=vmem, size = 0x12000, scoped, tag = 'internal scratch']
  %s0 = inlined_call_operand.vmem [shape: f32[512,64], index: 0, kind: input, shape index: {}]
  %s1 = inlined_call_operand.vmem [shape: bf16[64,64], index: 1, kind: input, shape index: {}]
  %s2 = inlined_call_operand.vmem [shape: f32[1,64], index: 2, kind: input, shape index: {}]
  %s3 = inlined_call_operand.vmem [shape: bf16[64,64], index: 3, kind: input, shape index: {}]
  %s4 = inlined_call_operand.vmem [shape: f32[1,64], index: 4, kind: input, shape index: {}]
  %s5 = inlined_call_operand.vmem [shape: bf16[64,64], index: 5, kind: input, shape index: {}]
  %s6 = inlined_call_operand.vmem [shape: f32[1,64], index: 6, kind: input, shape index: {}]
  %s7 = inlined_call_operand.vmem [shape: f32[512,64], index: 7, kind: output, shape index: {}]
  %s8 = sld [smem:[#allocation0]]
  $region61: #{tpu_custom_call.1} parent=0
    _
  %s10 = ssub.s32 1, %s8
  %s11 = scalar_select 0, %s10, %s8
  loop: start=0, step=1, limit=4
  $region2: #{tpu_custom_call.1} parent=0 // loop_pre_header
    _
  $region3: #{tpu_custom_call.1} parent=0 // loop_header
    %s13 = sphi 0, %s17
    %p14 = scmp.ge.s32.totalorder %s13, 4
    %s23 = sphi 0, %s25
    %s26 = sphi 0, %s23
    %s27 = sphi 0, %s26
    %s43 = sphi 0, %s27
    %s47 = sphi 0, %s47
    %s49 = sphi 0, %s47
    %s50 = sphi 0, %s49
    %s64 = sphi 0, %s50
    %s68 = sphi 0, %s68
    %s70 = sphi 0, %s68
    %s71 = sphi 0, %s70
    %s85 = sphi 0, %s71
    %s89 = sphi 0, %s89
    %s91 = sphi 0, %s89
    %s92 = sphi 0, %s91
    %s106 = sphi 0, %s92
    %s110 = sphi 0, %s110
    %s112 = sphi 0, %s110
    %s113 = sphi 0, %s112
    %s127 = sphi 0, %s113
    %s131 = sphi 0, %s131
    %s133 = sphi 0, %s131
    %s134 = sphi 0, %s133
    %s148 = sphi 0, %s134
    %s152 = sphi 0, %s152
    %s154 = sphi 0, %s152
    %s155 = sphi 0, %s154
    %s169 = sphi 0, %s155
    %s175 = sphi 0, %s177
    %s178 = sphi 0, %s175
    %s179 = sphi 0, %s178
    %s195 = sphi 0, %s179
  $region4: #{tpu_custom_call.1} parent=0 // loop_header_branch
    %16 = sbr.rel (%p14) target = $region8
  $region5: #{tpu_custom_call.1} parent=0 // loop_body
    %s18 = ssub.s32 %s13, 1
    %s19 = ssub.s32 %s13, 2
    %s20 = sadd.s32 %s13, 1
    %s21 = ssub.s32 %s13, %s20
    %p22 = scmp.eq.s32.totalorder %s21, 0
    %s24 = sadd.s32 %s23, 1
    %s25 = scalar_select %p22, %s23, %s24
    %p28 = pneg %p22
    %p29 = scmp.eq.s32.totalorder %s13, 1
    %p30 = por %p28, %p29
    %p31 = scmp.ne.s32.totalorder %s23, %s26
    %p32 = scmp.eq.s32.totalorder %s13, 0
    %p33 = por %p31, %p32
    %p34 = scmp.ne.s32.totalorder %s23, %s26
    %p35 = scmp.eq.s32.totalorder %s18, 1
    %p36 = por %p34, %p35
    %p37 = scmp.ne.s32.totalorder %s26, %s27
    %p38 = scmp.eq.s32.totalorder %s18, 0
    %p39 = por %p37, %p38
    %p40 = scmp.ne.s32.totalorder %s26, %s27
    %p41 = scmp.eq.s32.totalorder %s19, 1
    %p42 = por %p40, %p41
    %p44 = scmp.ne.s32.totalorder %s27, %s43
    %p45 = scmp.eq.s32.totalorder %s19, 0
    %p46 = por %p44, %p45
    %s48 = sadd.s32 %s47, 1
    %p51 = scmp.eq.s32.totalorder %s13, 1
    %p52 = scmp.ne.s32.totalorder %s47, %s49
    %p53 = scmp.eq.s32.totalorder %s13, 0
    %p54 = por %p52, %p53
    %p55 = scmp.ne.s32.totalorder %s47, %s49
    %p56 = scmp.eq.s32.totalorder %s18, 1
    %p57 = por %p55, %p56
    %p58 = scmp.ne.s32.totalorder %s49, %s50
    %p59 = scmp.eq.s32.totalorder %s18, 0
    %p60 = por %p58, %p59
    %p61 = scmp.ne.s32.totalorder %s49, %s50
    %p62 = scmp.eq.s32.totalorder %s19, 1
    %p63 = por %p61, %p62
    %p65 = scmp.ne.s32.totalorder %s50, %s64
    %p66 = scmp.eq.s32.totalorder %s19, 0
    %p67 = por %p65, %p66
    %s69 = sadd.s32 %s68, 1
    %p72 = scmp.eq.s32.totalorder %s13, 1
    %p73 = scmp.ne.s32.totalorder %s68, %s70
    %p74 = scmp.eq.s32.totalorder %s13, 0
    %p75 = por %p73, %p74
    %p76 = scmp.ne.s32.totalorder %s68, %s70
    %p77 = scmp.eq.s32.totalorder %s18, 1
    %p78 = por %p76, %p77
    %p79 = scmp.ne.s32.totalorder %s70, %s71
    %p80 = scmp.eq.s32.totalorder %s18, 0
    %p81 = por %p79, %p80
    %p82 = scmp.ne.s32.totalorder %s70, %s71
    %p83 = scmp.eq.s32.totalorder %s19, 1
    %p84 = por %p82, %p83
    %p86 = scmp.ne.s32.totalorder %s71, %s85
    %p87 = scmp.eq.s32.totalorder %s19, 0
    %p88 = por %p86, %p87
    %s90 = sadd.s32 %s89, 1
    %p93 = scmp.eq.s32.totalorder %s13, 1
    %p94 = scmp.ne.s32.totalorder %s89, %s91
    %p95 = scmp.eq.s32.totalorder %s13, 0
    %p96 = por %p94, %p95
    %p97 = scmp.ne.s32.totalorder %s89, %s91
    %p98 = scmp.eq.s32.totalorder %s18, 1
    %p99 = por %p97, %p98
    %p100 = scmp.ne.s32.totalorder %s91, %s92
    %p101 = scmp.eq.s32.totalorder %s18, 0
    %p102 = por %p100, %p101
    %p103 = scmp.ne.s32.totalorder %s91, %s92
    %p104 = scmp.eq.s32.totalorder %s19, 1
    %p105 = por %p103, %p104
    %p107 = scmp.ne.s32.totalorder %s92, %s106
    %p108 = scmp.eq.s32.totalorder %s19, 0
    %p109 = por %p107, %p108
    %s111 = sadd.s32 %s110, 1
    %p114 = scmp.eq.s32.totalorder %s13, 1
    %p115 = scmp.ne.s32.totalorder %s110, %s112
    %p116 = scmp.eq.s32.totalorder %s13, 0
    %p117 = por %p115, %p116
    %p118 = scmp.ne.s32.totalorder %s110, %s112
    %p119 = scmp.eq.s32.totalorder %s18, 1
    %p120 = por %p118, %p119
    %p121 = scmp.ne.s32.totalorder %s112, %s113
    %p122 = scmp.eq.s32.totalorder %s18, 0
    %p123 = por %p121, %p122
    %p124 = scmp.ne.s32.totalorder %s112, %s113
    %p125 = scmp.eq.s32.totalorder %s19, 1
    %p126 = por %p124, %p125
    %p128 = scmp.ne.s32.totalorder %s113, %s127
    %p129 = scmp.eq.s32.totalorder %s19, 0
    %p130 = por %p128, %p129
    %s132 = sadd.s32 %s131, 1
    %p135 = scmp.eq.s32.totalorder %s13, 1
    %p136 = scmp.ne.s32.totalorder %s131, %s133
    %p137 = scmp.eq.s32.totalorder %s13, 0
    %p138 = por %p136, %p137
    %p139 = scmp.ne.s32.totalorder %s131, %s133
    %p140 = scmp.eq.s32.totalorder %s18, 1
    %p141 = por %p139, %p140
    %p142 = scmp.ne.s32.totalorder %s133, %s134
    %p143 = scmp.eq.s32.totalorder %s18, 0
    %p144 = por %p142, %p143
    %p145 = scmp.ne.s32.totalorder %s133, %s134
    %p146 = scmp.eq.s32.totalorder %s19, 1
    %p147 = por %p145, %p146
    %p149 = scmp.ne.s32.totalorder %s134, %s148
    %p150 = scmp.eq.s32.totalorder %s19, 0
    %p151 = por %p149, %p150
    %s153 = sadd.s32 %s152, 1
    %p156 = scmp.eq.s32.totalorder %s13, 1
    %p157 = scmp.ne.s32.totalorder %s152, %s154
    %p158 = scmp.eq.s32.totalorder %s13, 0
    %p159 = por %p157, %p158
    %p160 = scmp.ne.s32.totalorder %s152, %s154
    %p161 = scmp.eq.s32.totalorder %s18, 1
    %p162 = por %p160, %p161
    %p163 = scmp.ne.s32.totalorder %s154, %s155
    %p164 = scmp.eq.s32.totalorder %s18, 0
    %p165 = por %p163, %p164
    %p166 = scmp.ne.s32.totalorder %s154, %s155
    %p167 = scmp.eq.s32.totalorder %s19, 1
    %p168 = por %p166, %p167
    %p170 = scmp.ne.s32.totalorder %s155, %s169
    %p171 = scmp.eq.s32.totalorder %s19, 0
    %p172 = por %p170, %p171
    %s173 = ssub.s32 %s13, %s20
    %p174 = scmp.eq.s32.totalorder %s173, 0
    %s176 = sadd.s32 %s175, 1
    %s177 = scalar_select %p174, %s175, %s176
    %p180 = pneg %p174
    %p181 = scmp.eq.s32.totalorder %s13, 1
    %p182 = por %p180, %p181
    %p183 = scmp.ne.s32.totalorder %s175, %s178
    %p184 = scmp.eq.s32.totalorder %s13, 0
    %p185 = por %p183, %p184
    %p186 = scmp.ne.s32.totalorder %s175, %s178
    %p187 = scmp.eq.s32.totalorder %s18, 1
    %p188 = por %p186, %p187
    %p189 = scmp.ne.s32.totalorder %s178, %s179
    %p190 = scmp.eq.s32.totalorder %s18, 0
    %p191 = por %p189, %p190
    %p192 = scmp.ne.s32.totalorder %s178, %s179
    %p193 = scmp.eq.s32.totalorder %s19, 1
    %p194 = por %p192, %p193
    %p196 = scmp.ne.s32.totalorder %s179, %s195
    %p197 = scmp.eq.s32.totalorder %s19, 0
    %p198 = por %p196, %p197
    %p199 = scmp.le.s32.totalorder 1, %s13
    %p200 = scmp.lt.s32.totalorder %s13, 3
    %p201 = pnand %p199, %p200
    %p202 = pneg %p201
    // Predicated region
    $region9: #{tpu_custom_call.1} parent=5 // pred_check
      _
    $region10: #{tpu_custom_call.1} parent=5 // pred_check_branch
      %204 = sbr.rel (%p201) target = $region12
    $region11: #{tpu_custom_call.1} parent=5 // pred_region
      %s205 = ssub.s32 %s13, 1
      // Predicated region
      $region13: #{tpu_custom_call.1} parent=11 // pred_check
        %p206 = pneg %p60
      $region14: #{tpu_custom_call.1} parent=11 // pred_check_branch
        %208 = sbr.rel (%p206) target = $region16
      $region15: #{tpu_custom_call.1} parent=11 // pred_region
        _
      $region16: #{tpu_custom_call.1} parent=11 // pred_fallthru
        _
      // Predicated region
      $region17: #{tpu_custom_call.1} parent=11 // pred_check
        %p209 = pneg %p81
      $region18: #{tpu_custom_call.1} parent=11 // pred_check_branch
        %211 = sbr.rel (%p209) target = $region20
      $region19: #{tpu_custom_call.1} parent=11 // pred_region
        _
      $region20: #{tpu_custom_call.1} parent=11 // pred_fallthru
        _
      // Predicated region
      $region21: #{tpu_custom_call.1} parent=11 // pred_check
        %p212 = pneg %p102
      $region22: #{tpu_custom_call.1} parent=11 // pred_check_branch
        %214 = sbr.rel (%p212) target = $region24
      $region23: #{tpu_custom_call.1} parent=11 // pred_region
        _
      $region24: #{tpu_custom_call.1} parent=11 // pred_fallthru
        _
      // Predicated region
      $region25: #{tpu_custom_call.1} parent=11 // pred_check
        %p215 = pneg %p123
      $region26: #{tpu_custom_call.1} parent=11 // pred_check_branch
        %217 = sbr.rel (%p215) target = $region28
      $region27: #{tpu_custom_call.1} parent=11 // pred_region
        _
      $region28: #{tpu_custom_call.1} parent=11 // pred_fallthru
        _
      // Predicated region
      $region29: #{tpu_custom_call.1} parent=11 // pred_check
        %p218 = pneg %p144
      $region30: #{tpu_custom_call.1} parent=11 // pred_check_branch
        %220 = sbr.rel (%p218) target = $region32
      $region31: #{tpu_custom_call.1} parent=11 // pred_region
        _
      $region32: #{tpu_custom_call.1} parent=11 // pred_fallthru
        _
      // Predicated region
      $region33: #{tpu_custom_call.1} parent=11 // pred_check
        %p221 = pneg %p165
      $region34: #{tpu_custom_call.1} parent=11 // pred_check_branch
        %223 = sbr.rel (%p221) target = $region36
      $region35: #{tpu_custom_call.1} parent=11 // pred_region
        _
      $region36: #{tpu_custom_call.1} parent=11 // pred_fallthru
        _
    $region12: #{tpu_custom_call.1} parent=5 // pred_fallthru
      _
    %p224 = scmp.lt.s32.totalorder %s13, 2
    // Predicated region
    $region37: #{tpu_custom_call.1} parent=5 // pred_check
      %p225 = pneg %p224
    $region38: #{tpu_custom_call.1} parent=5 // pred_check_branch
      %227 = sbr.rel (%p225) target = $region40
    $region39: #{tpu_custom_call.1} parent=5 // pred_region
      // Predicated region
      $region41: #{tpu_custom_call.1} parent=39 // pred_check
        %p228 = pneg %p33
      $region42: #{tpu_custom_call.1} parent=39 // pred_check_branch
        %230 = sbr.rel (%p228) target = $region44
      $region43: #{tpu_custom_call.1} parent=39 // pred_region
        %s231 = smul.u32 32, %s13
        %p232 = scmp.lt.s32.totalorder %s231, 63
        %s233 = scalar_select %p232, %s231, 63
        %s234 = smul.addr %s233, 8
        %s235 = scalar_lea.vmem %s0, %s234
        %s236 = smul.u32 32, %s13
      $region44: #{tpu_custom_call.1} parent=39 // pred_fallthru
        _
    $region40: #{tpu_custom_call.1} parent=5 // pred_fallthru
      _
    %p237 = scmp.le.s32.totalorder 1, %s13
    %p238 = scmp.lt.s32.totalorder %s13, 3
    %p239 = pnand %p237, %p238
    %p240 = pneg %p239
    // Predicated region
    $region45: #{tpu_custom_call.1} parent=5 // pred_check
      _
    $region46: #{tpu_custom_call.1} parent=5 // pred_check_branch
      %242 = sbr.rel (%p239) target = $region48
    $region47: #{tpu_custom_call.1} parent=5 // pred_region
      %s243 = ssub.s32 %s13, 1
      %s244 = smul.u32 32, %s18
      %p245 = scmp.lt.s32.totalorder %s244, 63
      %s246 = scalar_select %p245, %s244, 63
      %s247 = smul.addr %s246, 8
      %s248 = scalar_lea.vmem %s0, %s247
      %p249 = pneg %p39
      %p250 = pneg %p36
      %p251 = pneg %p60
      %p252 = pneg %p57
      %p253 = pneg %p81
      %p254 = pneg %p78
      %p255 = pneg %p102
      %p256 = pneg %p99
      %p257 = pneg %p123
      %p258 = pneg %p120
      %p259 = pneg %p144
      %p260 = pneg %p141
      %p261 = pneg %p165
      %p262 = pneg %p162
      %p263 = pneg %p191
      %p264 = pneg %p188
      %s265 = smul.u32 32, %s18
      %p266 = scmp.lt.s32.totalorder %s265, 63
      %s267 = scalar_select %p266, %s265, 63
      %s268 = smul.addr %s267, 8
      %s269 = scalar_lea.vmem %s7, %s268
      %s270 = smul.u32 32, %s18
      %p271 = scmp.lt.s32.totalorder %s270, 63
      %s272 = scalar_select %p271, %s270, 63
      %s273 = smul.addr %s272, 8
      %s274 = scalar_lea.vmem %s0, %s273
      %s275 = smul.u32 32, %s18
      %s276 = smul.u32 32, %s18
      %p277 = scmp.lt.s32.totalorder %s276, 63
      %s278 = scalar_select %p277, %s276, 63
      %s279 = smul.addr %s278, 8
      %s280 = scalar_lea.vmem %s7, %s279
      %s281 = smul.u32 32, %s18
      %v283 = vld [vmem:[%s274] sm:$0xff]
      %v284 = vld [vmem:[%s274 + $0x8] sm:$0xff]
      %v285 = vld [vmem:[%s274 + $0x10] sm:$0xff]
      %v286 = vld [vmem:[%s274 + $0x18] sm:$0xff]
      %v287 = vld [vmem:[%s274 + $0x20] sm:$0xff]
      %v288 = vld [vmem:[%s274 + $0x28] sm:$0xff]
      %v289 = vld [vmem:[%s274 + $0x30] sm:$0xff]
      %v290 = vld [vmem:[%s274 + $0x38] sm:$0xff]
      %v291 = vld [vmem:[%s274 + $0x40] sm:$0xff]
      %v292 = vld [vmem:[%s274 + $0x48] sm:$0xff]
      %v293 = vld [vmem:[%s274 + $0x50] sm:$0xff]
      %v294 = vld [vmem:[%s274 + $0x58] sm:$0xff]
      %v295 = vld [vmem:[%s274 + $0x60] sm:$0xff]
      %v296 = vld [vmem:[%s274 + $0x68] sm:$0xff]
      %v297 = vld [vmem:[%s274 + $0x70] sm:$0xff]
      %v298 = vld [vmem:[%s274 + $0x78] sm:$0xff]
      %v299 = vld [vmem:[%s274 + $0x80] sm:$0xff]
      %v300 = vld [vmem:[%s274 + $0x88] sm:$0xff]
      %v301 = vld [vmem:[%s274 + $0x90] sm:$0xff]
      %v302 = vld [vmem:[%s274 + $0x98] sm:$0xff]
      %v303 = vld [vmem:[%s274 + $0xa0] sm:$0xff]
      %v304 = vld [vmem:[%s274 + $0xa8] sm:$0xff]
      %v305 = vld [vmem:[%s274 + $0xb0] sm:$0xff]
      %v306 = vld [vmem:[%s274 + $0xb8] sm:$0xff]
      %v307 = vld [vmem:[%s274 + $0xc0] sm:$0xff]
      %v308 = vld [vmem:[%s274 + $0xc8] sm:$0xff]
      %v309 = vld [vmem:[%s274 + $0xd0] sm:$0xff]
      %v310 = vld [vmem:[%s274 + $0xd8] sm:$0xff]
      %v311 = vld [vmem:[%s274 + $0xe0] sm:$0xff]
      %v312 = vld [vmem:[%s274 + $0xe8] sm:$0xff]
      %v313 = vld [vmem:[%s274 + $0xf0] sm:$0xff]
      %v314 = vld [vmem:[%s274 + $0xf8] sm:$0xff]
      %v315 = vpack.c.bf16 %v284, %v283
      %v316 = vpack.c.bf16 %v286, %v285
      %v317 = vpack.c.bf16 %v288, %v287
      %v318 = vpack.c.bf16 %v290, %v289
      %v319 = vpack.c.bf16 %v292, %v291
      %v320 = vpack.c.bf16 %v294, %v293
      %v321 = vpack.c.bf16 %v296, %v295
      %v322 = vpack.c.bf16 %v298, %v297
      %v323 = vpack.c.bf16 %v300, %v299
      %v324 = vpack.c.bf16 %v302, %v301
      %v325 = vpack.c.bf16 %v304, %v303
      %v326 = vpack.c.bf16 %v306, %v305
      %v327 = vpack.c.bf16 %v308, %v307
      %v328 = vpack.c.bf16 %v310, %v309
      %v329 = vpack.c.bf16 %v312, %v311
      %v330 = vpack.c.bf16 %v314, %v313
      %v331 = vld [vmem:[%s1] sm:$0xf]
      %v332 = vld [vmem:[%s1 + $0x4] sm:$0xf]
      %v333 = vld [vmem:[%s1 + $0x8] sm:$0xf]
      %v334 = vld [vmem:[%s1 + $0xc] sm:$0xf]
      %v335 = vld [vmem:[%s1 + $0x10] sm:$0xf]
      %v336 = vld [vmem:[%s1 + $0x14] sm:$0xf]
      %v337 = vld [vmem:[%s1 + $0x18] sm:$0xf]
      %v338 = vld [vmem:[%s1 + $0x1c] sm:$0xf]
      %v339 = vld [vmem:[%s2] sm:$0x1]
      %v341 = vlaneseq
      %v342 = vshrl.u32 %v341, 7
      %v343 = vsub.s32 0, %v342
      %v344 = vrot.slane %v339, %v343
      %v354 = vunpack.c.l.b16 %v331
      %v355 = vunpack.c.l.b16 %v332
      %v356 = vunpack.c.l.b16 %v333
      %v357 = vunpack.c.l.b16 %v334
      %v358 = vunpack.c.l.b16 %v335
      %v359 = vunpack.c.l.b16 %v336
      %v360 = vunpack.c.l.b16 %v337
      %v361 = vunpack.c.l.b16 %v338
      %v362 = vpack.c.b16 %v355, %v354
      %v363 = vpack.c.b16 %v357, %v356
      %v364 = vpack.c.b16 %v359, %v358
      %v365 = vpack.c.b16 %v361, %v360
      %vm370 = vcmask 523264
      %v372 = vsel %vm370, %v315, 0
      %v375 = vsel %vm370, %v316, 0
      %v378 = vsel %vm370, %v317, 0
      %v381 = vsel %vm370, %v318, 0
      %v384 = vsel %vm370, %v319, 0
      %v387 = vsel %vm370, %v320, 0
      %v390 = vsel %vm370, %v321, 0
      %v393 = vsel %vm370, %v322, 0
      %v396 = vsel %vm370, %v323, 0
      %v399 = vsel %vm370, %v324, 0
      %v402 = vsel %vm370, %v325, 0
      %v405 = vsel %vm370, %v326, 0
      %v408 = vsel %vm370, %v327, 0
      %v411 = vsel %vm370, %v328, 0
      %v414 = vsel %vm370, %v329, 0
      %v417 = vsel %vm370, %v330, 0
      %419 = vmatprep.subr.bf16.mxu0 0
      %420 = vmatpush1.bf16.msra.mxu0 %v362
      %421 = vmatprep.subr.bf16.mxu0 0
      %422 = vmatpush1.bf16.msra.mxu0 %v363
      %423 = vmatprep.subr.bf16.mxu0 0
      %424 = vmatpush1.bf16.msra.mxu0 %v364
      %425 = vmatprep.subr.bf16.mxu0 0
      %426 = vmatpush1.bf16.msra.mxu0 %v365
      %427 = vmatprep.subr.bf16.mxu0 0
      %428 = vmatpush1.bf16.msra.mxu0 0
      %429 = vmatprep.subr.bf16.mxu0 0
      %430 = vmatpush1.bf16.msra.mxu0 0
      %431 = vmatprep.subr.bf16.mxu0 0
      %432 = vmatpush1.bf16.msra.mxu0 0
      %433 = vmatprep.subr.bf16.mxu0 0
      %434 = vmatpush1.bf16.msra.mxu0 0
      %435 = vmatprep.subr.bf16.mxu0 0
      %436 = vmatpush1.bf16.msra.mxu0 0
      %437 = vmatprep.subr.bf16.mxu0 0
      %438 = vmatpush1.bf16.msra.mxu0 0
      %439 = vmatprep.subr.bf16.mxu0 0
      %440 = vmatpush1.bf16.msra.mxu0 0
      %441 = vmatprep.subr.bf16.mxu0 0
      %442 = vmatpush1.bf16.msra.mxu0 0
      %443 = vmatprep.subr.bf16.mxu0 0
      %444 = vmatpush1.bf16.msra.mxu0 0
      %445 = vmatprep.subr.bf16.mxu0 0
      %446 = vmatpush1.bf16.msra.mxu0 0
      %447 = vmatprep.subr.bf16.mxu0 0
      %448 = vmatpush1.bf16.msra.mxu0 0
      %449 = vmatprep.subr.bf16.mxu0 0
      %450 = vmatpush1.bf16.msra.mxu0 0
      %451 = vmatprep.mubr.bf16.mxu0 0
      %452 = vmatmul.mubr.bf16.gmra.mrb[0].mxu0 %v372
      %v453 = vpop.f32.mrb[0].mxu0
      %v454 = vadd.f32 %v344, %v453
      %v455 = vpop.f32.mrb[0].mxu0
      %v456 = vpop.f32.mrb[0].mxu0
      %v457 = vadd.f32 %v344, %v456
      %v458 = vpop.f32.mrb[0].mxu0
      %459 = vmatprep.mubr.bf16.mxu0 0
      %460 = vmatmul.mubr.bf16.gmra.mrb[0].mxu0 %v375
      %v461 = vpop.f32.mrb[0].mxu0
      %v462 = vadd.f32 %v344, %v461
      %v463 = vpop.f32.mrb[0].mxu0
      %v464 = vpop.f32.mrb[0].mxu0
      %v465 = vadd.f32 %v344, %v464
      %v466 = vpop.f32.mrb[0].mxu0
      %467 = vmatprep.mubr.bf16.mxu0 0
      %468 = vmatmul.mubr.bf16.gmra.mrb[0].mxu0 %v378
      %v469 = vpop.f32.mrb[0].mxu0
      %v470 = vadd.f32 %v344, %v469
      %v471 = vpop.f32.mrb[0].mxu0
      %v472 = vpop.f32.mrb[0].mxu0
      %v473 = vadd.f32 %v344, %v472
      %v474 = vpop.f32.mrb[0].mxu0
      %475 = vmatprep.mubr.bf16.mxu0 0
      %476 = vmatmul.mubr.bf16.gmra.mrb[0].mxu0 %v381
      %v477 = vpop.f32.mrb[0].mxu0
      %v478 = vadd.f32 %v344, %v477
      %v479 = vpop.f32.mrb[0].mxu0
      %v480 = vpop.f32.mrb[0].mxu0
      %v481 = vadd.f32 %v344, %v480
      %v482 = vpop.f32.mrb[0].mxu0
      %483 = vmatprep.mubr.bf16.mxu0 0
      %484 = vmatmul.mubr.bf16.gmra.mrb[0].mxu0 %v384
      %v485 = vpop.f32.mrb[0].mxu0
      %v486 = vadd.f32 %v344, %v485
      %v487 = vpop.f32.mrb[0].mxu0
      %v488 = vpop.f32.mrb[0].mxu0
      %v489 = vadd.f32 %v344, %v488
      %v490 = vpop.f32.mrb[0].mxu0
      %491 = vmatprep.mubr.bf16.mxu0 0
      %492 = vmatmul.mubr.bf16.gmra.mrb[0].mxu0 %v387
      %v493 = vpop.f32.mrb[0].mxu0
      %v494 = vadd.f32 %v344, %v493
      %v495 = vpop.f32.mrb[0].mxu0
      %v496 = vpop.f32.mrb[0].mxu0
      %v497 = vadd.f32 %v344, %v496
      %v498 = vpop.f32.mrb[0].mxu0
      %499 = vmatprep.mubr.bf16.mxu0 0
      %500 = vmatmul.mubr.bf16.gmra.mrb[0].mxu0 %v390
      %v501 = vpop.f32.mrb[0].mxu0
      %v502 = vadd.f32 %v344, %v501
      %v503 = vpop.f32.mrb[0].mxu0
      %v504 = vpop.f32.mrb[0].mxu0
      %v505 = vadd.f32 %v344, %v504
      %v506 = vpop.f32.mrb[0].mxu0
      %507 = vmatprep.mubr.bf16.mxu0 0
      %508 = vmatmul.mubr.bf16.gmra.mrb[0].mxu0 %v393
      %v509 = vpop.f32.mrb[0].mxu0
      %v510 = vadd.f32 %v344, %v509
      %v511 = vpop.f32.mrb[0].mxu0
      %v512 = vpop.f32.mrb[0].mxu0
      %v513 = vadd.f32 %v344, %v512
      %v514 = vpop.f32.mrb[0].mxu0
      %515 = vmatprep.mubr.bf16.mxu0 0
      %516 = vmatmul.mubr.bf16.gmra.mrb[0].mxu0 %v396
      %v517 = vpop.f32.mrb[0].mxu0
      %v518 = vadd.f32 %v344, %v517
      %v519 = vpop.f32.mrb[0].mxu0
      %v520 = vpop.f32.mrb[0].mxu0
      %v521 = vadd.f32 %v344, %v520
      %v522 = vpop.f32.mrb[0].mxu0
      %523 = vmatprep.mubr.bf16.mxu0 0
      %524 = vmatmul.mubr.bf16.gmra.mrb[0].mxu0 %v399
      %v525 = vpop.f32.mrb[0].mxu0
      %v526 = vadd.f32 %v344, %v525
      %v527 = vpop.f32.mrb[0].mxu0
      %v528 = vpop.f32.mrb[0].mxu0
      %v529 = vadd.f32 %v344, %v528
      %v530 = vpop.f32.mrb[0].mxu0
      %531 = vmatprep.mubr.bf16.mxu0 0
      %532 = vmatmul.mubr.bf16.gmra.mrb[0].mxu0 %v402
      %v533 = vpop.f32.mrb[0].mxu0
      %v534 = vadd.f32 %v344, %v533
      %v535 = vpop.f32.mrb[0].mxu0
      %v536 = vpop.f32.mrb[0].mxu0
      %v537 = vadd.f32 %v344, %v536
      %v538 = vpop.f32.mrb[0].mxu0
      %539 = vmatprep.mubr.bf16.mxu0 0
      %540 = vmatmul.mubr.bf16.gmra.mrb[0].mxu0 %v405
      %v541 = vpop.f32.mrb[0].mxu0
      %v542 = vadd.f32 %v344, %v541
      %v543 = vpop.f32.mrb[0].mxu0
      %v544 = vpop.f32.mrb[0].mxu0
      %v545 = vadd.f32 %v344, %v544
      %v546 = vpop.f32.mrb[0].mxu0
      %547 = vmatprep.mubr.bf16.mxu0 0
      %548 = vmatmul.mubr.bf16.gmra.mrb[0].mxu0 %v408
      %v549 = vpop.f32.mrb[0].mxu0
      %v550 = vadd.f32 %v344, %v549
      %v551 = vpop.f32.mrb[0].mxu0
      %v552 = vpop.f32.mrb[0].mxu0
      %v553 = vadd.f32 %v344, %v552
      %v554 = vpop.f32.mrb[0].mxu0
      %555 = vmatprep.mubr.bf16.mxu0 0
      %556 = vmatmul.mubr.bf16.gmra.mrb[0].mxu0 %v411
      %v557 = vpop.f32.mrb[0].mxu0
      %v558 = vadd.f32 %v344, %v557
      %v559 = vpop.f32.mrb[0].mxu0
      %v560 = vpop.f32.mrb[0].mxu0
      %v561 = vadd.f32 %v344, %v560
      %v562 = vpop.f32.mrb[0].mxu0
      %563 = vmatprep.mubr.bf16.mxu0 0
      %564 = vmatmul.mubr.bf16.gmra.mrb[0].mxu0 %v414
      %v565 = vpop.f32.mrb[0].mxu0
      %v566 = vadd.f32 %v344, %v565
      %v567 = vpop.f32.mrb[0].mxu0
      %v568 = vpop.f32.mrb[0].mxu0
      %v569 = vadd.f32 %v344, %v568
      %v570 = vpop.f32.mrb[0].mxu0
      %571 = vmatprep.mubr.bf16.mxu0 0
      %572 = vmatmul.mubr.bf16.gmra.mrb[0].mxu0 %v417
      %v573 = vpop.f32.mrb[0].mxu0
      %v574 = vadd.f32 %v344, %v573
      %v575 = vpop.f32.mrb[0].mxu0
      %v576 = vpop.f32.mrb[0].mxu0
      %v577 = vadd.f32 %v344, %v576
      %v578 = vpop.f32.mrb[0].mxu0
      %579 = vdwg.mxu0
      %v580 = vmax.f32 %v454, 0.0
      %v581 = vmax.f32 %v457, 0.0
      %v582 = vmax.f32 %v462, 0.0
      %v583 = vmax.f32 %v465, 0.0
      %v584 = vmax.f32 %v470, 0.0
      %v585 = vmax.f32 %v473, 0.0
      %v586 = vmax.f32 %v478, 0.0
      %v587 = vmax.f32 %v481, 0.0
      %v588 = vmax.f32 %v486, 0.0
      %v589 = vmax.f32 %v489, 0.0
      %v590 = vmax.f32 %v494, 0.0
      %v591 = vmax.f32 %v497, 0.0
      %v592 = vmax.f32 %v502, 0.0
      %v593 = vmax.f32 %v505, 0.0
      %v594 = vmax.f32 %v510, 0.0
      %v595 = vmax.f32 %v513, 0.0
      %v596 = vmax.f32 %v518, 0.0
      %v597 = vmax.f32 %v521, 0.0
      %v598 = vmax.f32 %v526, 0.0
      %v599 = vmax.f32 %v529, 0.0
      %v600 = vmax.f32 %v534, 0.0
      %v601 = vmax.f32 %v537, 0.0
      %v602 = vmax.f32 %v542, 0.0
      %v603 = vmax.f32 %v545, 0.0
      %v604 = vmax.f32 %v550, 0.0
      %v605 = vmax.f32 %v553, 0.0
      %v606 = vmax.f32 %v558, 0.0
      %v607 = vmax.f32 %v561, 0.0
      %v608 = vmax.f32 %v566, 0.0
      %v609 = vmax.f32 %v569, 0.0
      %v610 = vmax.f32 %v574, 0.0
      %v611 = vmax.f32 %v577, 0.0
      %v612 = vpack.c.bf16 %v581, %v580
      %v613 = vpack.c.bf16 %v583, %v582
      %v614 = vpack.c.bf16 %v585, %v584
      %v615 = vpack.c.bf16 %v587, %v586
      %v616 = vpack.c.bf16 %v589, %v588
      %v617 = vpack.c.bf16 %v591, %v590
      %v618 = vpack.c.bf16 %v593, %v592
      %v619 = vpack.c.bf16 %v595, %v594
      %v620 = vpack.c.bf16 %v597, %v596
      %v621 = vpack.c.bf16 %v599, %v598
      %v622 = vpack.c.bf16 %v601, %v600
      %v623 = vpack.c.bf16 %v603, %v602
      %v624 = vpack.c.bf16 %v605, %v604
      %v625 = vpack.c.bf16 %v607, %v606
      %v626 = vpack.c.bf16 %v609, %v608
      %v627 = vpack.c.bf16 %v611, %v610
      %v628 = vld [vmem:[%s3] sm:$0xf]
      %v629 = vld [vmem:[%s3 + $0x4] sm:$0xf]
      %v630 = vld [vmem:[%s3 + $0x8] sm:$0xf]
      %v631 = vld [vmem:[%s3 + $0xc] sm:$0xf]
      %v632 = vld [vmem:[%s3 + $0x10] sm:$0xf]
      %v633 = vld [vmem:[%s3 + $0x14] sm:$0xf]
      %v634 = vld [vmem:[%s3 + $0x18] sm:$0xf]
      %v635 = vld [vmem:[%s3 + $0x1c] sm:$0xf]
      %v636 = vld [vmem:[%s4] sm:$0x1]
      %v638 = vlaneseq
      %v639 = vshrl.u32 %v638, 7
      %v640 = vsub.s32 0, %v639
      %v641 = vrot.slane %v636, %v640
      %v651 = vunpack.c.l.b16 %v628
      %v652 = vunpack.c.l.b16 %v629
      %v653 = vunpack.c.l.b16 %v630
      %v654 = vunpack.c.l.b16 %v631
      %v655 = vunpack.c.l.b16 %v632
      %v656 = vunpack.c.l.b16 %v633
      %v657 = vunpack.c.l.b16 %v634
      %v658 = vunpack.c.l.b16 %v635
      %v659 = vpack.c.b16 %v652, %v651
      %v660 = vpack.c.b16 %v654, %v653
      %v661 = vpack.c.b16 %v656, %v655
      %v662 = vpack.c.b16 %v658, %v657
      %v668 = vsel %vm370, %v612, 0
      %v671 = vsel %vm370, %v613, 0
      %v674 = vsel %vm370, %v614, 0
      %v677 = vsel %vm370, %v615, 0
      %v680 = vsel %vm370, %v616, 0
      %v683 = vsel %vm370, %v617, 0
      %v686 = vsel %vm370, %v618, 0
      %v689 = vsel %vm370, %v619, 0
      %v692 = vsel %vm370, %v620, 0
      %v695 = vsel %vm370, %v621, 0
      %v698 = vsel %vm370, %v622, 0
      %v701 = vsel %vm370, %v623, 0
      %v704 = vsel %vm370, %v624, 0
      %v707 = vsel %vm370, %v625, 0
      %v710 = vsel %vm370, %v626, 0
      %v713 = vsel %vm370, %v627, 0
      %715 = vmatprep.subr.bf16.mxu0 0
      %716 = vmatpush1.bf16.msra.mxu0 %v659
      %717 = vmatprep.subr.bf16.mxu0 0
      %718 = vmatpush1.bf16.msra.mxu0 %v660
      %719 = vmatprep.subr.bf16.mxu0 0
      %720 = vmatpush1.bf16.msra.mxu0 %v661
      %721 = vmatprep.subr.bf16.mxu0 0
      %722 = vmatpush1.bf16.msra.mxu0 %v662
      %723 = vmatprep.subr.bf16.mxu0 0
      %724 = vmatpush1.bf16.msra.mxu0 0
      %725 = vmatprep.subr.bf16.mxu0 0
      %726 = vmatpush1.bf16.msra.mxu0 0
      %727 = vmatprep.subr.bf16.mxu0 0
      %728 = vmatpush1.bf16.msra.mxu0 0
      %729 = vmatprep.subr.bf16.mxu0 0
      %730 = vmatpush1.bf16.msra.mxu0 0
      %731 = vmatprep.subr.bf16.mxu0 0
      %732 = vmatpush1.bf16.msra.mxu0 0
      %733 = vmatprep.subr.bf16.mxu0 0
      %734 = vmatpush1.bf16.msra.mxu0 0
      %735 = vmatprep.subr.bf16.mxu0 0
      %736 = vmatpush1.bf16.msra.mxu0 0
      %737 = vmatprep.subr.bf16.mxu0 0
      %738 = vmatpush1.bf16.msra.mxu0 0
      %739 = vmatprep.subr.bf16.mxu0 0
      %740 = vmatpush1.bf16.msra.mxu0 0
      %741 = vmatprep.subr.bf16.mxu0 0
      %742 = vmatpush1.bf16.msra.mxu0 0
      %743 = vmatprep.subr.bf16.mxu0 0
      %744 = vmatpush1.bf16.msra.mxu0 0
      %745 = vmatprep.subr.bf16.mxu0 0
      %746 = vmatpush1.bf16.msra.mxu0 0
      %747 = vmatprep.mubr.bf16.mxu0 0
      %748 = vmatmul.mubr.bf16.gmra.mrb[0].mxu0 %v668
      %v749 = vpop.f32.mrb[0].mxu0
      %v750 = vadd.f32 %v641, %v749
      %v751 = vpop.f32.mrb[0].mxu0
      %v752 = vpop.f32.mrb[0].mxu0
      %v753 = vadd.f32 %v641, %v752
      %v754 = vpop.f32.mrb[0].mxu0
      %755 = vmatprep.mubr.bf16.mxu0 0
      %756 = vmatmul.mubr.bf16.gmra.mrb[0].mxu0 %v671
      %v757 = vpop.f32.mrb[0].mxu0
      %v758 = vadd.f32 %v641, %v757
      %v759 = vpop.f32.mrb[0].mxu0
      %v760 = vpop.f32.mrb[0].mxu0
      %v761 = vadd.f32 %v641, %v760
      %v762 = vpop.f32.mrb[0].mxu0
      %763 = vmatprep.mubr.bf16.mxu0 0
      %764 = vmatmul.mubr.bf16.gmra.mrb[0].mxu0 %v674
      %v765 = vpop.f32.mrb[0].mxu0
      %v766 = vadd.f32 %v641, %v765
      %v767 = vpop.f32.mrb[0].mxu0
      %v768 = vpop.f32.mrb[0].mxu0
      %v769 = vadd.f32 %v641, %v768
      %v770 = vpop.f32.mrb[0].mxu0
      %771 = vmatprep.mubr.bf16.mxu0 0
      %772 = vmatmul.mubr.bf16.gmra.mrb[0].mxu0 %v677
      %v773 = vpop.f32.mrb[0].mxu0
      %v774 = vadd.f32 %v641, %v773
      %v775 = vpop.f32.mrb[0].mxu0
      %v776 = vpop.f32.mrb[0].mxu0
      %v777 = vadd.f32 %v641, %v776
      %v778 = vpop.f32.mrb[0].mxu0
      %779 = vmatprep.mubr.bf16.mxu0 0
      %780 = vmatmul.mubr.bf16.gmra.mrb[0].mxu0 %v680
      %v781 = vpop.f32.mrb[0].mxu0
      %v782 = vadd.f32 %v641, %v781
      %v783 = vpop.f32.mrb[0].mxu0
      %v784 = vpop.f32.mrb[0].mxu0
      %v785 = vadd.f32 %v641, %v784
      %v786 = vpop.f32.mrb[0].mxu0
      %787 = vmatprep.mubr.bf16.mxu0 0
      %788 = vmatmul.mubr.bf16.gmra.mrb[0].mxu0 %v683
      %v789 = vpop.f32.mrb[0].mxu0
      %v790 = vadd.f32 %v641, %v789
      %v791 = vpop.f32.mrb[0].mxu0
      %v792 = vpop.f32.mrb[0].mxu0
      %v793 = vadd.f32 %v641, %v792
      %v794 = vpop.f32.mrb[0].mxu0
      %795 = vmatprep.mubr.bf16.mxu0 0
      %796 = vmatmul.mubr.bf16.gmra.mrb[0].mxu0 %v686
      %v797 = vpop.f32.mrb[0].mxu0
      %v798 = vadd.f32 %v641, %v797
      %v799 = vpop.f32.mrb[0].mxu0
      %v800 = vpop.f32.mrb[0].mxu0
      %v801 = vadd.f32 %v641, %v800
      %v802 = vpop.f32.mrb[0].mxu0
      %803 = vmatprep.mubr.bf16.mxu0 0
      %804 = vmatmul.mubr.bf16.gmra.mrb[0].mxu0 %v689
      %v805 = vpop.f32.mrb[0].mxu0
      %v806 = vadd.f32 %v641, %v805
      %v807 = vpop.f32.mrb[0].mxu0
      %v808 = vpop.f32.mrb[0].mxu0
      %v809 = vadd.f32 %v641, %v808
      %v810 = vpop.f32.mrb[0].mxu0
      %811 = vmatprep.mubr.bf16.mxu0 0
      %812 = vmatmul.mubr.bf16.gmra.mrb[0].mxu0 %v692
      %v813 = vpop.f32.mrb[0].mxu0
      %v814 = vadd.f32 %v641, %v813
      %v815 = vpop.f32.mrb[0].mxu0
      %v816 = vpop.f32.mrb[0].mxu0
      %v817 = vadd.f32 %v641, %v816
      %v818 = vpop.f32.mrb[0].mxu0
      %819 = vmatprep.mubr.bf16.mxu0 0
      %820 = vmatmul.mubr.bf16.gmra.mrb[0].mxu0 %v695
      %v821 = vpop.f32.mrb[0].mxu0
      %v822 = vadd.f32 %v641, %v821
      %v823 = vpop.f32.mrb[0].mxu0
      %v824 = vpop.f32.mrb[0].mxu0
      %v825 = vadd.f32 %v641, %v824
      %v826 = vpop.f32.mrb[0].mxu0
      %827 = vmatprep.mubr.bf16.mxu0 0
      %828 = vmatmul.mubr.bf16.gmra.mrb[0].mxu0 %v698
      %v829 = vpop.f32.mrb[0].mxu0
      %v830 = vadd.f32 %v641, %v829
      %v831 = vpop.f32.mrb[0].mxu0
      %v832 = vpop.f32.mrb[0].mxu0
      %v833 = vadd.f32 %v641, %v832
      %v834 = vpop.f32.mrb[0].mxu0
      %835 = vmatprep.mubr.bf16.mxu0 0
      %836 = vmatmul.mubr.bf16.gmra.mrb[0].mxu0 %v701
      %v837 = vpop.f32.mrb[0].mxu0
      %v838 = vadd.f32 %v641, %v837
      %v839 = vpop.f32.mrb[0].mxu0
      %v840 = vpop.f32.mrb[0].mxu0
      %v841 = vadd.f32 %v641, %v840
      %v842 = vpop.f32.mrb[0].mxu0
      %843 = vmatprep.mubr.bf16.mxu0 0
      %844 = vmatmul.mubr.bf16.gmra.mrb[0].mxu0 %v704
      %v845 = vpop.f32.mrb[0].mxu0
      %v846 = vadd.f32 %v641, %v845
      %v847 = vpop.f32.mrb[0].mxu0
      %v848 = vpop.f32.mrb[0].mxu0
      %v849 = vadd.f32 %v641, %v848
      %v850 = vpop.f32.mrb[0].mxu0
      %851 = vmatprep.mubr.bf16.mxu0 0
      %852 = vmatmul.mubr.bf16.gmra.mrb[0].mxu0 %v707
      %v853 = vpop.f32.mrb[0].mxu0
      %v854 = vadd.f32 %v641, %v853
      %v855 = vpop.f32.mrb[0].mxu0
      %v856 = vpop.f32.mrb[0].mxu0
      %v857 = vadd.f32 %v641, %v856
      %v858 = vpop.f32.mrb[0].mxu0
      %859 = vmatprep.mubr.bf16.mxu0 0
      %860 = vmatmul.mubr.bf16.gmra.mrb[0].mxu0 %v710
      %v861 = vpop.f32.mrb[0].mxu0
      %v862 = vadd.f32 %v641, %v861
      %v863 = vpop.f32.mrb[0].mxu0
      %v864 = vpop.f32.mrb[0].mxu0
      %v865 = vadd.f32 %v641, %v864
      %v866 = vpop.f32.mrb[0].mxu0
      %867 = vmatprep.mubr.bf16.mxu0 0
      %868 = vmatmul.mubr.bf16.gmra.mrb[0].mxu0 %v713
      %v869 = vpop.f32.mrb[0].mxu0
      %v870 = vadd.f32 %v641, %v869
      %v871 = vpop.f32.mrb[0].mxu0
      %v872 = vpop.f32.mrb[0].mxu0
      %v873 = vadd.f32 %v641, %v872
      %v874 = vpop.f32.mrb[0].mxu0
      %875 = vdwg.mxu0
      %v876 = vmax.f32 %v750, 0.0
      %v877 = vmax.f32 %v753, 0.0
      %v878 = vmax.f32 %v758, 0.0
      %v879 = vmax.f32 %v761, 0.0
      %v880 = vmax.f32 %v766, 0.0
      %v881 = vmax.f32 %v769, 0.0
      %v882 = vmax.f32 %v774, 0.0
      %v883 = vmax.f32 %v777, 0.0
      %v884 = vmax.f32 %v782, 0.0
      %v885 = vmax.f32 %v785, 0.0
      %v886 = vmax.f32 %v790, 0.0
      %v887 = vmax.f32 %v793, 0.0
      %v888 = vmax.f32 %v798, 0.0
      %v889 = vmax.f32 %v801, 0.0
      %v890 = vmax.f32 %v806, 0.0
      %v891 = vmax.f32 %v809, 0.0
      %v892 = vmax.f32 %v814, 0.0
      %v893 = vmax.f32 %v817, 0.0
      %v894 = vmax.f32 %v822, 0.0
      %v895 = vmax.f32 %v825, 0.0
      %v896 = vmax.f32 %v830, 0.0
      %v897 = vmax.f32 %v833, 0.0
      %v898 = vmax.f32 %v838, 0.0
      %v899 = vmax.f32 %v841, 0.0
      %v900 = vmax.f32 %v846, 0.0
      %v901 = vmax.f32 %v849, 0.0
      %v902 = vmax.f32 %v854, 0.0
      %v903 = vmax.f32 %v857, 0.0
      %v904 = vmax.f32 %v862, 0.0
      %v905 = vmax.f32 %v865, 0.0
      %v906 = vmax.f32 %v870, 0.0
      %v907 = vmax.f32 %v873, 0.0
      %v908 = vpack.c.bf16 %v877, %v876
      %v909 = vpack.c.bf16 %v879, %v878
      %v910 = vpack.c.bf16 %v881, %v880
      %v911 = vpack.c.bf16 %v883, %v882
      %v912 = vpack.c.bf16 %v885, %v884
      %v913 = vpack.c.bf16 %v887, %v886
      %v914 = vpack.c.bf16 %v889, %v888
      %v915 = vpack.c.bf16 %v891, %v890
      %v916 = vpack.c.bf16 %v893, %v892
      %v917 = vpack.c.bf16 %v895, %v894
      %v918 = vpack.c.bf16 %v897, %v896
      %v919 = vpack.c.bf16 %v899, %v898
      %v920 = vpack.c.bf16 %v901, %v900
      %v921 = vpack.c.bf16 %v903, %v902
      %v922 = vpack.c.bf16 %v905, %v904
      %v923 = vpack.c.bf16 %v907, %v906
      %v924 = vld [vmem:[%s5] sm:$0xf]
      %v925 = vld [vmem:[%s5 + $0x4] sm:$0xf]
      %v926 = vld [vmem:[%s5 + $0x8] sm:$0xf]
      %v927 = vld [vmem:[%s5 + $0xc] sm:$0xf]
      %v928 = vld [vmem:[%s5 + $0x10] sm:$0xf]
      %v929 = vld [vmem:[%s5 + $0x14] sm:$0xf]
      %v930 = vld [vmem:[%s5 + $0x18] sm:$0xf]
      %v931 = vld [vmem:[%s5 + $0x1c] sm:$0xf]
      %v932 = vld [vmem:[%s6] sm:$0x1]
      %v934 = vlaneseq
      %v935 = vshrl.u32 %v934, 7
      %v936 = vsub.s32 0, %v935
      %v937 = vrot.slane %v932, %v936
      %v947 = vunpack.c.l.b16 %v924
      %v948 = vunpack.c.l.b16 %v925
      %v949 = vunpack.c.l.b16 %v926
      %v950 = vunpack.c.l.b16 %v927
      %v951 = vunpack.c.l.b16 %v928
      %v952 = vunpack.c.l.b16 %v929
      %v953 = vunpack.c.l.b16 %v930
      %v954 = vunpack.c.l.b16 %v931
      %v955 = vpack.c.b16 %v948, %v947
      %v956 = vpack.c.b16 %v950, %v949
      %v957 = vpack.c.b16 %v952, %v951
      %v958 = vpack.c.b16 %v954, %v953
      %v964 = vsel %vm370, %v908, 0
      %v967 = vsel %vm370, %v909, 0
      %v970 = vsel %vm370, %v910, 0
      %v973 = vsel %vm370, %v911, 0
      %v976 = vsel %vm370, %v912, 0
      %v979 = vsel %vm370, %v913, 0
      %v982 = vsel %vm370, %v914, 0
      %v985 = vsel %vm370, %v915, 0
      %v988 = vsel %vm370, %v916, 0
      %v991 = vsel %vm370, %v917, 0
      %v994 = vsel %vm370, %v918, 0
      %v997 = vsel %vm370, %v919, 0
      %v1000 = vsel %vm370, %v920, 0
      %v1003 = vsel %vm370, %v921, 0
      %v1006 = vsel %vm370, %v922, 0
      %v1009 = vsel %vm370, %v923, 0
      %1011 = vmatprep.subr.bf16.mxu0 0
      %1012 = vmatpush1.bf16.msra.mxu0 %v955
      %1013 = vmatprep.subr.bf16.mxu0 0
      %1014 = vmatpush1.bf16.msra.mxu0 %v956
      %1015 = vmatprep.subr.bf16.mxu0 0
      %1016 = vmatpush1.bf16.msra.mxu0 %v957
      %1017 = vmatprep.subr.bf16.mxu0 0
      %1018 = vmatpush1.bf16.msra.mxu0 %v958
      %1019 = vmatprep.subr.bf16.mxu0 0
      %1020 = vmatpush1.bf16.msra.mxu0 0
      %1021 = vmatprep.subr.bf16.mxu0 0
      %1022 = vmatpush1.bf16.msra.mxu0 0
      %1023 = vmatprep.subr.bf16.mxu0 0
      %1024 = vmatpush1.bf16.msra.mxu0 0
      %1025 = vmatprep.subr.bf16.mxu0 0
      %1026 = vmatpush1.bf16.msra.mxu0 0
      %1027 = vmatprep.subr.bf16.mxu0 0
      %1028 = vmatpush1.bf16.msra.mxu0 0
      %1029 = vmatprep.subr.bf16.mxu0 0
      %1030 = vmatpush1.bf16.msra.mxu0 0
      %1031 = vmatprep.subr.bf16.mxu0 0
      %1032 = vmatpush1.bf16.msra.mxu0 0
      %1033 = vmatprep.subr.bf16.mxu0 0
      %1034 = vmatpush1.bf16.msra.mxu0 0
      %1035 = vmatprep.subr.bf16.mxu0 0
      %1036 = vmatpush1.bf16.msra.mxu0 0
      %1037 = vmatprep.subr.bf16.mxu0 0
      %1038 = vmatpush1.bf16.msra.mxu0 0
      %1039 = vmatprep.subr.bf16.mxu0 0
      %1040 = vmatpush1.bf16.msra.mxu0 0
      %1041 = vmatprep.subr.bf16.mxu0 0
      %1042 = vmatpush1.bf16.msra.mxu0 0
      %1043 = vmatprep.mubr.bf16.mxu0 0
      %1044 = vmatmul.mubr.bf16.gmra.mrb[0].mxu0 %v964
      %v1045 = vpop.f32.mrb[0].mxu0
      %v1046 = vadd.f32 %v937, %v1045
      %v1047 = vpop.f32.mrb[0].mxu0
      %v1048 = vpop.f32.mrb[0].mxu0
      %v1049 = vadd.f32 %v937, %v1048
      %v1050 = vpop.f32.mrb[0].mxu0
      %1051 = vmatprep.mubr.bf16.mxu0 0
      %1052 = vmatmul.mubr.bf16.gmra.mrb[0].mxu0 %v967
      %v1053 = vpop.f32.mrb[0].mxu0
      %v1054 = vadd.f32 %v937, %v1053
      %v1055 = vpop.f32.mrb[0].mxu0
      %v1056 = vpop.f32.mrb[0].mxu0
      %v1057 = vadd.f32 %v937, %v1056
      %v1058 = vpop.f32.mrb[0].mxu0
      %1059 = vmatprep.mubr.bf16.mxu0 0
      %1060 = vmatmul.mubr.bf16.gmra.mrb[0].mxu0 %v970
      %v1061 = vpop.f32.mrb[0].mxu0
      %v1062 = vadd.f32 %v937, %v1061
      %v1063 = vpop.f32.mrb[0].mxu0
      %v1064 = vpop.f32.mrb[0].mxu0
      %v1065 = vadd.f32 %v937, %v1064
      %v1066 = vpop.f32.mrb[0].mxu0
      %1067 = vmatprep.mubr.bf16.mxu0 0
      %1068 = vmatmul.mubr.bf16.gmra.mrb[0].mxu0 %v973
      %v1069 = vpop.f32.mrb[0].mxu0
      %v1070 = vadd.f32 %v937, %v1069
      %v1071 = vpop.f32.mrb[0].mxu0
      %v1072 = vpop.f32.mrb[0].mxu0
      %v1073 = vadd.f32 %v937, %v1072
      %v1074 = vpop.f32.mrb[0].mxu0
      %1075 = vmatprep.mubr.bf16.mxu0 0
      %1076 = vmatmul.mubr.bf16.gmra.mrb[0].mxu0 %v976
      %v1077 = vpop.f32.mrb[0].mxu0
      %v1078 = vadd.f32 %v937, %v1077
      %v1079 = vpop.f32.mrb[0].mxu0
      %v1080 = vpop.f32.mrb[0].mxu0
      %v1081 = vadd.f32 %v937, %v1080
      %v1082 = vpop.f32.mrb[0].mxu0
      %1083 = vmatprep.mubr.bf16.mxu0 0
      %1084 = vmatmul.mubr.bf16.gmra.mrb[0].mxu0 %v979
      %v1085 = vpop.f32.mrb[0].mxu0
      %v1086 = vadd.f32 %v937, %v1085
      %v1087 = vpop.f32.mrb[0].mxu0
      %v1088 = vpop.f32.mrb[0].mxu0
      %v1089 = vadd.f32 %v937, %v1088
      %v1090 = vpop.f32.mrb[0].mxu0
      %1091 = vmatprep.mubr.bf16.mxu0 0
      %1092 = vmatmul.mubr.bf16.gmra.mrb[0].mxu0 %v982
      %v1093 = vpop.f32.mrb[0].mxu0
      %v1094 = vadd.f32 %v937, %v1093
      %v1095 = vpop.f32.mrb[0].mxu0
      %v1096 = vpop.f32.mrb[0].mxu0
      %v1097 = vadd.f32 %v937, %v1096
      %v1098 = vpop.f32.mrb[0].mxu0
      %1099 = vmatprep.mubr.bf16.mxu0 0
      %1100 = vmatmul.mubr.bf16.gmra.mrb[0].mxu0 %v985
      %v1101 = vpop.f32.mrb[0].mxu0
      %v1102 = vadd.f32 %v937, %v1101
      %v1103 = vpop.f32.mrb[0].mxu0
      %v1104 = vpop.f32.mrb[0].mxu0
      %v1105 = vadd.f32 %v937, %v1104
      %v1106 = vpop.f32.mrb[0].mxu0
      %1107 = vmatprep.mubr.bf16.mxu0 0
      %1108 = vmatmul.mubr.bf16.gmra.mrb[0].mxu0 %v988
      %v1109 = vpop.f32.mrb[0].mxu0
      %v1110 = vadd.f32 %v937, %v1109
      %v1111 = vpop.f32.mrb[0].mxu0
      %v1112 = vpop.f32.mrb[0].mxu0
      %v1113 = vadd.f32 %v937, %v1112
      %v1114 = vpop.f32.mrb[0].mxu0
      %1115 = vmatprep.mubr.bf16.mxu0 0
      %1116 = vmatmul.mubr.bf16.gmra.mrb[0].mxu0 %v991
      %v1117 = vpop.f32.mrb[0].mxu0
      %v1118 = vadd.f32 %v937, %v1117
      %v1119 = vpop.f32.mrb[0].mxu0
      %v1120 = vpop.f32.mrb[0].mxu0
      %v1121 = vadd.f32 %v937, %v1120
      %v1122 = vpop.f32.mrb[0].mxu0
      %1123 = vmatprep.mubr.bf16.mxu0 0
      %1124 = vmatmul.mubr.bf16.gmra.mrb[0].mxu0 %v994
      %v1125 = vpop.f32.mrb[0].mxu0
      %v1126 = vadd.f32 %v937, %v1125
      %v1127 = vpop.f32.mrb[0].mxu0
      %v1128 = vpop.f32.mrb[0].mxu0
      %v1129 = vadd.f32 %v937, %v1128
      %v1130 = vpop.f32.mrb[0].mxu0
      %1131 = vmatprep.mubr.bf16.mxu0 0
      %1132 = vmatmul.mubr.bf16.gmra.mrb[0].mxu0 %v997
      %v1133 = vpop.f32.mrb[0].mxu0
      %v1134 = vadd.f32 %v937, %v1133
      %v1135 = vpop.f32.mrb[0].mxu0
      %v1136 = vpop.f32.mrb[0].mxu0
      %v1137 = vadd.f32 %v937, %v1136
      %v1138 = vpop.f32.mrb[0].mxu0
      %1139 = vmatprep.mubr.bf16.mxu0 0
      %1140 = vmatmul.mubr.bf16.gmra.mrb[0].mxu0 %v1000
      %v1141 = vpop.f32.mrb[0].mxu0
      %v1142 = vadd.f32 %v937, %v1141
      %v1143 = vpop.f32.mrb[0].mxu0
      %v1144 = vpop.f32.mrb[0].mxu0
      %v1145 = vadd.f32 %v937, %v1144
      %v1146 = vpop.f32.mrb[0].mxu0
      %1147 = vmatprep.mubr.bf16.mxu0 0
      %1148 = vmatmul.mubr.bf16.gmra.mrb[0].mxu0 %v1003
      %v1149 = vpop.f32.mrb[0].mxu0
      %v1150 = vadd.f32 %v937, %v1149
      %v1151 = vpop.f32.mrb[0].mxu0
      %v1152 = vpop.f32.mrb[0].mxu0
      %v1153 = vadd.f32 %v937, %v1152
      %v1154 = vpop.f32.mrb[0].mxu0
      %1155 = vmatprep.mubr.bf16.mxu0 0
      %1156 = vmatmul.mubr.bf16.gmra.mrb[0].mxu0 %v1006
      %v1157 = vpop.f32.mrb[0].mxu0
      %v1158 = vadd.f32 %v937, %v1157
      %v1159 = vpop.f32.mrb[0].mxu0
      %v1160 = vpop.f32.mrb[0].mxu0
      %v1161 = vadd.f32 %v937, %v1160
      %v1162 = vpop.f32.mrb[0].mxu0
      %1163 = vmatprep.mubr.bf16.mxu0 0
      %1164 = vmatmul.mubr.bf16.gmra.mrb[0].mxu0 %v1009
      %v1165 = vpop.f32.mrb[0].mxu0
      %v1166 = vadd.f32 %v937, %v1165
      %v1167 = vpop.f32.mrb[0].mxu0
      %v1168 = vpop.f32.mrb[0].mxu0
      %v1169 = vadd.f32 %v937, %v1168
      %v1170 = vpop.f32.mrb[0].mxu0
      %1171 = vdwg.mxu0
      %v1172 = vadd.f32 %v1046, %v283
      %v1173 = vadd.f32 %v1049, %v284
      %v1174 = vadd.f32 %v1054, %v285
      %v1175 = vadd.f32 %v1057, %v286
      %v1176 = vadd.f32 %v1062, %v287
      %v1177 = vadd.f32 %v1065, %v288
      %v1178 = vadd.f32 %v1070, %v289
      %v1179 = vadd.f32 %v1073, %v290
      %v1180 = vadd.f32 %v1078, %v291
      %v1181 = vadd.f32 %v1081, %v292
      %v1182 = vadd.f32 %v1086, %v293
      %v1183 = vadd.f32 %v1089, %v294
      %v1184 = vadd.f32 %v1094, %v295
      %v1185 = vadd.f32 %v1097, %v296
      %v1186 = vadd.f32 %v1102, %v297
      %v1187 = vadd.f32 %v1105, %v298
      %v1188 = vadd.f32 %v1110, %v299
      %v1189 = vadd.f32 %v1113, %v300
      %v1190 = vadd.f32 %v1118, %v301
      %v1191 = vadd.f32 %v1121, %v302
      %v1192 = vadd.f32 %v1126, %v303
      %v1193 = vadd.f32 %v1129, %v304
      %v1194 = vadd.f32 %v1134, %v305
      %v1195 = vadd.f32 %v1137, %v306
      %v1196 = vadd.f32 %v1142, %v307
      %v1197 = vadd.f32 %v1145, %v308
      %v1198 = vadd.f32 %v1150, %v309
      %v1199 = vadd.f32 %v1153, %v310
      %v1200 = vadd.f32 %v1158, %v311
      %v1201 = vadd.f32 %v1161, %v312
      %v1202 = vadd.f32 %v1166, %v313
      %v1203 = vadd.f32 %v1169, %v314
      %v1204 = vmax.f32 %v1172, 0.0
      %v1205 = vmax.f32 %v1173, 0.0
      %v1206 = vmax.f32 %v1174, 0.0
      %v1207 = vmax.f32 %v1175, 0.0
      %v1208 = vmax.f32 %v1176, 0.0
      %v1209 = vmax.f32 %v1177, 0.0
      %v1210 = vmax.f32 %v1178, 0.0
      %v1211 = vmax.f32 %v1179, 0.0
      %v1212 = vmax.f32 %v1180, 0.0
      %v1213 = vmax.f32 %v1181, 0.0
      %v1214 = vmax.f32 %v1182, 0.0
      %v1215 = vmax.f32 %v1183, 0.0
      %v1216 = vmax.f32 %v1184, 0.0
      %v1217 = vmax.f32 %v1185, 0.0
      %v1218 = vmax.f32 %v1186, 0.0
      %v1219 = vmax.f32 %v1187, 0.0
      %v1220 = vmax.f32 %v1188, 0.0
      %v1221 = vmax.f32 %v1189, 0.0
      %v1222 = vmax.f32 %v1190, 0.0
      %v1223 = vmax.f32 %v1191, 0.0
      %v1224 = vmax.f32 %v1192, 0.0
      %v1225 = vmax.f32 %v1193, 0.0
      %v1226 = vmax.f32 %v1194, 0.0
      %v1227 = vmax.f32 %v1195, 0.0
      %v1228 = vmax.f32 %v1196, 0.0
      %v1229 = vmax.f32 %v1197, 0.0
      %v1230 = vmax.f32 %v1198, 0.0
      %v1231 = vmax.f32 %v1199, 0.0
      %v1232 = vmax.f32 %v1200, 0.0
      %v1233 = vmax.f32 %v1201, 0.0
      %v1234 = vmax.f32 %v1202, 0.0
      %v1235 = vmax.f32 %v1203, 0.0
      %1236 = vst.msk [vmem:[%s280] sm:$0xff] %vm370, %v1204
      %1237 = vst.msk [vmem:[%s280 + $0x8] sm:$0xff] %vm370, %v1205
      %1238 = vst.msk [vmem:[%s280 + $0x10] sm:$0xff] %vm370, %v1206
      %1239 = vst.msk [vmem:[%s280 + $0x18] sm:$0xff] %vm370, %v1207
      %1240 = vst.msk [vmem:[%s280 + $0x20] sm:$0xff] %vm370, %v1208
      %1241 = vst.msk [vmem:[%s280 + $0x28] sm:$0xff] %vm370, %v1209
      %1242 = vst.msk [vmem:[%s280 + $0x30] sm:$0xff] %vm370, %v1210
      %1243 = vst.msk [vmem:[%s280 + $0x38] sm:$0xff] %vm370, %v1211
      %1244 = vst.msk [vmem:[%s280 + $0x40] sm:$0xff] %vm370, %v1212
      %1245 = vst.msk [vmem:[%s280 + $0x48] sm:$0xff] %vm370, %v1213
      %1246 = vst.msk [vmem:[%s280 + $0x50] sm:$0xff] %vm370, %v1214
      %1247 = vst.msk [vmem:[%s280 + $0x58] sm:$0xff] %vm370, %v1215
      %1248 = vst.msk [vmem:[%s280 + $0x60] sm:$0xff] %vm370, %v1216
      %1249 = vst.msk [vmem:[%s280 + $0x68] sm:$0xff] %vm370, %v1217
      %1250 = vst.msk [vmem:[%s280 + $0x70] sm:$0xff] %vm370, %v1218
      %1251 = vst.msk [vmem:[%s280 + $0x78] sm:$0xff] %vm370, %v1219
      %1252 = vst.msk [vmem:[%s280 + $0x80] sm:$0xff] %vm370, %v1220
      %1253 = vst.msk [vmem:[%s280 + $0x88] sm:$0xff] %vm370, %v1221
      %1254 = vst.msk [vmem:[%s280 + $0x90] sm:$0xff] %vm370, %v1222
      %1255 = vst.msk [vmem:[%s280 + $0x98] sm:$0xff] %vm370, %v1223
      %1256 = vst.msk [vmem:[%s280 + $0xa0] sm:$0xff] %vm370, %v1224
      %1257 = vst.msk [vmem:[%s280 + $0xa8] sm:$0xff] %vm370, %v1225
      %1258 = vst.msk [vmem:[%s280 + $0xb0] sm:$0xff] %vm370, %v1226
      %1259 = vst.msk [vmem:[%s280 + $0xb8] sm:$0xff] %vm370, %v1227
      %1260 = vst.msk [vmem:[%s280 + $0xc0] sm:$0xff] %vm370, %v1228
      %1261 = vst.msk [vmem:[%s280 + $0xc8] sm:$0xff] %vm370, %v1229
      %1262 = vst.msk [vmem:[%s280 + $0xd0] sm:$0xff] %vm370, %v1230
      %1263 = vst.msk [vmem:[%s280 + $0xd8] sm:$0xff] %vm370, %v1231
      %1264 = vst.msk [vmem:[%s280 + $0xe0] sm:$0xff] %vm370, %v1232
      %1265 = vst.msk [vmem:[%s280 + $0xe8] sm:$0xff] %vm370, %v1233
      %1266 = vst.msk [vmem:[%s280 + $0xf0] sm:$0xff] %vm370, %v1234
      %1267 = vst.msk [vmem:[%s280 + $0xf8] sm:$0xff] %vm370, %v1235
      %s1268 = smul.u32 32, %s18
      %p1269 = scmp.lt.s32.totalorder %s1268, 63
      %s1270 = scalar_select %p1269, %s1268, 63
      %s1271 = smul.addr %s1270, 8
      %s1272 = scalar_lea.vmem %s7, %s1271
      // Predicated region
      $region49: #{tpu_custom_call.1} parent=47 // pred_check
        %p1273 = pneg %p188
      $region50: #{tpu_custom_call.1} parent=47 // pred_check_branch
        %1275 = sbr.rel (%p1273) target = $region52
      $region51: #{tpu_custom_call.1} parent=47 // pred_region
        %s1276 = smul.u32 32, %s18
      $region52: #{tpu_custom_call.1} parent=47 // pred_fallthru
        _
    $region48: #{tpu_custom_call.1} parent=5 // pred_fallthru
      _
    %p1277 = scmp.le.s32.totalorder 2, %s13
    // Predicated region
    $region53: #{tpu_custom_call.1} parent=5 // pred_check
      %p1278 = pneg %p1277
    $region54: #{tpu_custom_call.1} parent=5 // pred_check_branch
      %1280 = sbr.rel (%p1278) target = $region56
    $region55: #{tpu_custom_call.1} parent=5 // pred_region
      %s1281 = ssub.s32 %s13, 2
      // Predicated region
      $region57: #{tpu_custom_call.1} parent=55 // pred_check
        %p1282 = pneg %p194
      $region58: #{tpu_custom_call.1} parent=55 // pred_check_branch
        %1284 = sbr.rel (%p1282) target = $region60
      $region59: #{tpu_custom_call.1} parent=55 // pred_region
        %s1285 = smul.u32 32, %s19
        %p1286 = scmp.lt.s32.totalorder %s1285, 63
        %s1287 = scalar_select %p1286, %s1285, 63
        %s1288 = smul.addr %s1287, 8
        %s1289 = scalar_lea.vmem %s7, %s1288
      $region60: #{tpu_custom_call.1} parent=55 // pred_fallthru
        _
    $region56: #{tpu_custom_call.1} parent=5 // pred_fallthru
      _
  $region6: #{tpu_custom_call.1} parent=0 // loop_footer
    %s17 = sadd.s32 1, %s13
  $region7: #{tpu_custom_call.1} parent=0 // loop_footer_branch
    %12 = sbr.rel target = $region3
  $region8: #{tpu_custom_call.1} parent=0 // loop_exit
    _

</llo_original>
